<compile_context>
chip_gen: v5e
topology: v5e:2x2
jax: 0.10.0
libtpu: 0.0.40
codegen_flags: <defaults>
</compile_context>

<pallas_src>
import functools

import jax
import jax.numpy as jnp
from jax.experimental import pallas as pl
from jax.experimental.pallas import tpu as pltpu


def _round_up(x: int, m: int) -> int:
    return ((x + m - 1) // m) * m


def _cdiv(a: int, b: int) -> int:
    return -(-a // b)


def _focal_loss_kernel(x_ref, aux_ref, o_ref, *, gamma: float, gamma_int):
    x = x_ref[...].astype(jnp.float32)        # (TILE_R, C) logits, cast in VMEM
    aux = aux_ref[...]                        # (TILE_R, 2) f32: [target, alpha[target]]
    t = aux[:, 0:1].astype(jnp.int32)         # (TILE_R, 1) class ids (exact for ids < 2^24)
    a_t = aux[:, 1:2]                         # (TILE_R, 1) alpha[target] (0 on padded rows)

    # Numerically-stable log-softmax pieces along the class (lane) axis.
    m = jnp.max(x, axis=-1, keepdims=True)             # (TILE_R, 1)  XLU reduce
    z = x - m                                          # (TILE_R, C)
    s = jnp.sum(jnp.exp(z), axis=-1, keepdims=True)    # (TILE_R, 1)  EUP + XLU reduce

    # "Gather" the target-class shifted logit via a lane-index iota + select
    # (no (TILE_R, C) one-hot materialization / extra multiply).
    col = jax.lax.broadcasted_iota(jnp.int32, x.shape, 1)             # (TILE_R, C)
    z_t = jnp.sum(jnp.where(col == t, z, 0.0), axis=-1, keepdims=True)  # (TILE_R, 1)

    logp_t = z_t - jnp.log(s)                 # log-softmax at target
    p_t = jnp.exp(logp_t)                     # softmax at target (EUP)

    ce = -a_t * logp_t                        # weighted CE, reduction='none'
    one_minus_p = jnp.maximum(1.0 - p_t, 0.0)  # clamp against tiny negatives

    if gamma_int is not None:
        # Square-and-multiply: <= 2*log2(gamma) VPU multiplies on the column.
        mod = jnp.ones_like(one_minus_p)
        base = one_minus_p
        e = gamma_int
        while e > 0:
            if e & 1:
                mod = mod * base
            e >>= 1
            if e:
                base = base * base
    else:
        mod = jnp.power(one_minus_p, jnp.float32(gamma))

    focal = mod * ce                          # (TILE_R, 1); 0 on padded rows (a_t == 0)

    # Per-block partial sum written as a lane-dense (1, 8, 128) slab
    # (unmasked vst; value lives at [0, 0, 0], zeros elsewhere).
    partial = jnp.sum(focal)
    ri = jax.lax.broadcasted_iota(jnp.int32, (1, 8, 128), 1)
    ci = jax.lax.broadcasted_iota(jnp.int32, (1, 8, 128), 2)
    o_ref[...] = jnp.where((ri == 0) & (ci == 0), partial, 0.0)


def focal_loss(logits, target, alpha, gamma):
    """logits: (N, C) float (any), target: (N,) int, alpha: (C,) float."""
    N, C = logits.shape
    gamma = float(gamma)
    gamma_int = int(gamma) if gamma.is_integer() and 0.0 <= gamma <= 16.0 else None

    if N == 0:
        # torch.mean over an empty tensor is NaN.
        return jnp.asarray(jnp.nan, dtype=jnp.float32)

    target = target.astype(jnp.int32)
    # Gather per-sample class weights in the wrapper (length-N op) and merge
    # with the target ids into ONE (N, 2) f32 aux array: a single narrow DMA
    # per step, half the lane-padded VMEM overhead of two (N, 1) side inputs.
    alpha_t = jnp.take(alpha.astype(jnp.float32), target, axis=0)
    aux = jnp.stack([target.astype(jnp.float32), alpha_t], axis=1)     # (N, 2)

    # ---- VMEM-aware tile sizing (lane-padded footprint) ----
    itemsize = jnp.dtype(logits.dtype).itemsize
    c_pad = _round_up(C, 128)
    # Padded bytes per row in VMEM: logits row + aux row (padded to 128 lanes).
    row_bytes = c_pad * itemsize + 128 * 4

    try:
        vmem_cap = int(getattr(pltpu.get_tpu_info(), "vmem_capacity_bytes", 0))
    except Exception:
        vmem_cap = 0
    if vmem_cap <= 0:
        vmem_cap = 64 << 20        # conservative (v7x per-TC physical VMEM)
    # Per-block budget: ~1/8 of physical VMEM, clamped to [4 MiB, 16 MiB]
    # (double-buffered total stays well under every generation's VMEM).
    block_budget = max(4 << 20, min(16 << 20, vmem_cap // 8))

    n8 = _round_up(N, 8)
    max_tile_r = max(8, (block_budget // row_bytes) // 8 * 8)
    max_tile_r = min(max_tile_r, n8)

    num_blocks = _cdiv(n8, max_tile_r)
    if num_blocks > 1 and num_blocks % 2 == 1:
        # Even block count for a balanced split across v7x's two TensorCores.
        num_blocks += 1
    tile_r = _round_up(_cdiv(N, num_blocks), 8)      # balanced, <= max_tile_r
    n_pad = num_blocks * tile_r

    if n_pad != N:
        pad = n_pad - N
        logits = jnp.pad(logits, ((0, pad), (0, 0)))
        aux = jnp.pad(aux, ((0, pad), (0, 0)))       # alpha_t = 0 => padded rows contribute 0

    # Explicit scoped-VMEM limit: 2 buffers x (logits block + aux block) +
    # output slabs + headroom (v5e's 16 MiB scoped default would bind otherwise).
    block_bytes = tile_r * row_bytes
    out_bytes = 8 * 128 * 4
    vmem_limit = 2 * (block_bytes + out_bytes) + (2 << 20)
    vmem_limit = int(min(max(vmem_limit, 8 << 20), max(vmem_cap - (4 << 20), 8 << 20)))

    # Deeper pipelining on the logits stream only when blocks stay small and
    # there are many of them (hides exposed DMA latency; trivial VMEM cost).
    logits_pipeline_mode = None
    if num_blocks >= 3 and block_bytes <= (1 << 20):
        logits_pipeline_mode = pl.Buffered(3)
    logits_spec = pl.BlockSpec((tile_r, C), lambda i: (i, 0),
                               pipeline_mode=logits_pipeline_mode)

    kernel = functools.partial(_focal_loss_kernel, gamma=gamma, gamma_int=gamma_int)
    partials = pl.pallas_call(
        kernel,
        out_shape=jax.ShapeDtypeStruct((num_blocks, 8, 128), jnp.float32),
        grid=(num_blocks,),
        in_specs=[
            logits_spec,
            pl.BlockSpec((tile_r, 2), lambda i: (i, 0)),
        ],
        out_specs=pl.BlockSpec((1, 8, 128), lambda i: (i, 0, 0)),
        compiler_params=pltpu.CompilerParams(
            dimension_semantics=("parallel",),
            vmem_limit_bytes=vmem_limit),
        cost_estimate=pl.CostEstimate(
            flops=6 * n_pad * C,
            transcendentals=n_pad * C + 3 * n_pad,
            bytes_accessed=n_pad * C * itemsize + n_pad * 2 * 4
            + num_blocks * 8 * 128 * 4),
    )(logits, aux)

    # Final reduction over per-block partials; divide by the TRUE batch size.
    return jnp.sum(partials) / jnp.float32(N)


def _focal_loss_ref(logits, target, alpha, gamma):
    """Pure-JAX reference mirroring the PyTorch module."""
    logits = logits.astype(jnp.float32)
    logp = jax.nn.log_softmax(logits, axis=-1)
    p = jnp.exp(logp)
    logp_t = jnp.take_along_axis(logp, target[:, None], axis=1)[:, 0]
    p_t = jnp.take_along_axis(p, target[:, None], axis=1)[:, 0]
    ce = -alpha[target] * logp_t
    return jnp.mean((1.0 - p_t) ** gamma * ce)


if __name__ == "__main__":
    key = jax.random.PRNGKey(0)
    k1, k2 = jax.random.split(key)

    N, C = 20, 32          # deliberately not a multiple of 8 to exercise padding
    gamma = 2.0

    logits = jax.random.normal(k1, (N, C), dtype=jnp.float32)
    target = jax.random.randint(k2, (N,), 0, C, dtype=jnp.int32)
    # Deterministic per-class weights (module __init__ takes alpha as given).
    alpha = 0.5 + 0.5 * (jnp.arange(C, dtype=jnp.float32) / C)

    loss = focal_loss(logits, target, alpha, gamma)
    loss = jax.block_until_ready(loss)

    ref = _focal_loss_ref(logits, target, alpha, gamma)
    assert jnp.allclose(loss, ref, rtol=1e-5, atol=1e-5), (loss, ref)

    print("KERNEL_OK")
</pallas_src>

<mosaic_0001>
module attributes {stable_mosaic.version = 11 : i64} {
  func.func @_focal_loss_kernel(%arg0: i32, %arg1: memref<24x32xf32, #tpu.memory_space<vmem>>, %arg2: memref<24x2xf32, #tpu.memory_space<vmem>>, %arg3: memref<1x8x128xf32, #tpu.memory_space<vmem>>) attributes {dimension_semantics = [#tpu.dimension_semantics<parallel>], iteration_bounds = array<i64: 1>, scalar_prefetch = 0 : i64, scratch_operands = 0 : i64, tpu.core_type = #tpu.core_type<tc>, window_params = [{transform_indices = @transform_0, window_bounds = array<i64: 24, 32>}, {transform_indices = @transform_1, window_bounds = array<i64: 24, 2>}, {transform_indices = @transform_2, window_bounds = array<i64: 1, 8, 128>}]} {
    %c0 = arith.constant 0 : index
    %c0_0 = arith.constant 0 : index
    %0 = vector.load %arg1[%c0, %c0_0] : memref<24x32xf32, #tpu.memory_space<vmem>>, vector<24x32xf32>
    %c0_1 = arith.constant 0 : index
    %c0_2 = arith.constant 0 : index
    %1 = vector.load %arg2[%c0_1, %c0_2] : memref<24x2xf32, #tpu.memory_space<vmem>>, vector<24x2xf32>
    %2 = vector.extract_strided_slice %1 {offsets = [0, 0], sizes = [24, 1], strides = [1, 1]} : vector<24x2xf32> to vector<24x1xf32>
    %3 = arith.fptosi %2 : vector<24x1xf32> to vector<24x1xi32>
    %4 = vector.extract_strided_slice %1 {offsets = [0, 1], sizes = [24, 1], strides = [1, 1]} : vector<24x2xf32> to vector<24x1xf32>
    %cst = arith.constant dense<0xFF800000> : vector<24xf32>
    %5 = vector.multi_reduction <maximumf>, %0, %cst [1] : vector<24x32xf32> to vector<24xf32>
    %6 = vector.shape_cast %5 : vector<24xf32> to vector<24x1xf32>
    %7 = vector.broadcast %6 : vector<24x1xf32> to vector<24x32xf32>
    %8 = arith.subf %0, %7 : vector<24x32xf32>
    %9 = math.exp %8 : vector<24x32xf32>
    %cst_3 = arith.constant dense<0.000000e+00> : vector<24xf32>
    %10 = vector.multi_reduction <add>, %9, %cst_3 [1] : vector<24x32xf32> to vector<24xf32>
    %11 = vector.shape_cast %10 : vector<24xf32> to vector<24x1xf32>
    %12 = tpu.iota {dimensions = array<i32: 1>} : vector<24x32xi32>
    %13 = vector.broadcast %3 : vector<24x1xi32> to vector<24x32xi32>
    %14 = arith.cmpi eq, %12, %13 : vector<24x32xi32>
    %cst_4 = arith.constant 0.000000e+00 : f32
    %15 = vector.broadcast %cst_4 : f32 to vector<24x32xf32>
    %16 = arith.select %14, %8, %15 : vector<24x32xi1>, vector<24x32xf32>
    %cst_5 = arith.constant dense<0.000000e+00> : vector<24xf32>
    %17 = vector.multi_reduction <add>, %16, %cst_5 [1] : vector<24x32xf32> to vector<24xf32>
    %18 = vector.shape_cast %17 : vector<24xf32> to vector<24x1xf32>
    %19 = math.log %11 : vector<24x1xf32>
    %20 = arith.subf %18, %19 : vector<24x1xf32>
    %21 = math.exp %20 : vector<24x1xf32>
    %cst_6 = arith.constant 0.000000e+00 : f32
    %22 = vector.broadcast %cst_6 : f32 to vector<24x1xf32>
    %23 = arith.subf %22, %4 : vector<24x1xf32>
    %24 = arith.mulf %23, %20 : vector<24x1xf32>
    %cst_7 = arith.constant 1.000000e+00 : f32
    %25 = vector.broadcast %cst_7 : f32 to vector<24x1xf32>
    %26 = arith.subf %25, %21 : vector<24x1xf32>
    %cst_8 = arith.constant 0.000000e+00 : f32
    %27 = vector.broadcast %cst_8 : f32 to vector<24x1xf32>
    %28 = arith.maximumf %26, %27 : vector<24x1xf32>
    %cst_9 = arith.constant 1.000000e+00 : f32
    %29 = vector.broadcast %cst_9 : f32 to vector<24x1xf32>
    %30 = arith.mulf %28, %28 : vector<24x1xf32>
    %31 = arith.mulf %29, %30 : vector<24x1xf32>
    %32 = arith.mulf %31, %24 : vector<24x1xf32>
    %33 = vector.shape_cast %32 : vector<24x1xf32> to vector<1x24x1xf32>
    %cst_10 = arith.constant dense<0.000000e+00> : vector<1xf32>
    %34 = vector.multi_reduction <add>, %33, %cst_10 [1, 2] : vector<1x24x1xf32> to vector<1xf32>
    %35 = vector.shape_cast %34 : vector<1xf32> to vector<1x1x1xf32>
    %36 = vector.extract %35[0, 0, 0] : f32 from vector<1x1x1xf32>
    %37 = tpu.iota {dimensions = array<i32: 1>} : vector<1x8x128xi32>
    %38 = tpu.iota {dimensions = array<i32: 2>} : vector<1x8x128xi32>
    %c0_i32 = arith.constant 0 : i32
    %39 = vector.broadcast %c0_i32 : i32 to vector<1x8x128xi32>
    %40 = arith.cmpi eq, %37, %39 : vector<1x8x128xi32>
    %c0_i32_11 = arith.constant 0 : i32
    %41 = vector.broadcast %c0_i32_11 : i32 to vector<1x8x128xi32>
    %42 = arith.cmpi eq, %38, %41 : vector<1x8x128xi32>
    %43 = arith.andi %40, %42 : vector<1x8x128xi1>
    %cst_12 = arith.constant 0.000000e+00 : f32
    %44 = vector.broadcast %36 : f32 to vector<1x8x128xf32>
    %45 = vector.broadcast %cst_12 : f32 to vector<1x8x128xf32>
    %46 = arith.select %43, %44, %45 : vector<1x8x128xi1>, vector<1x8x128xf32>
    %c0_13 = arith.constant 0 : index
    %c0_14 = arith.constant 0 : index
    %c0_15 = arith.constant 0 : index
    %47 = vector.load %arg3[%c0_13, %c0_14, %c0_15] : memref<1x8x128xf32, #tpu.memory_space<vmem>>, vector<1x8x128xf32>
    tpu.vector_store %arg3[%c0_13, %c0_14, %c0_15], %46 {strides = array<i32>} : memref<1x8x128xf32, #tpu.memory_space<vmem>>, vector<1x8x128xf32>,
    return
  }
  func.func @transform_0(%arg0: i32) -> (i32, i32) {
    %c0_i32 = arith.constant 0 : i32
    %c0_i32_0 = arith.constant 0 : i32
    return %arg0, %c0_i32 : i32, i32
  }
  func.func @transform_1(%arg0: i32) -> (i32, i32) {
    %c0_i32 = arith.constant 0 : i32
    %c0_i32_0 = arith.constant 0 : i32
    return %arg0, %c0_i32 : i32, i32
  }
  func.func @transform_2(%arg0: i32) -> (i32, i32, i32) {
    %c0_i32 = arith.constant 0 : i32
    %c0_i32_0 = arith.constant 0 : i32
    %c0_i32_1 = arith.constant 0 : i32
    return %arg0, %c0_i32, %c0_i32_0 : i32, i32, i32
  }
}

</mosaic_0001>

<llo_original>
// kernel: tpu_custom_call.1
$region0: #{tpu_custom_call.1}
  #allocation0 [shape = 'u32[]', space=smem, size = 0x4, offset = 0x4, fixed_abs, tag = 'smem constant byte address 0x4 - core index']
  #allocation1 [shape = 'u32[72,128]{1,0:T(1,128)}', space=vmem, size = 0x9000, scoped, tag = 'internal scratch']
  %s0 = inlined_call_operand.vmem [shape: f32[24,32], index: 0, kind: input, shape index: {}]
  %s1 = inlined_call_operand.vmem [shape: f32[24,2], index: 1, kind: input, shape index: {}]
  %s2 = inlined_call_operand.hbm [shape: f32[1,8,128], index: 2, kind: output, shape index: {}]
  %s3 = sld [smem:[#allocation0]]
  $region18: #{tpu_custom_call.1} parent=0
    _
  %s5 = ssub.s32 1, %s3
  %s6 = scalar_select 0, %s5, %s3
  $region1: #{tpu_custom_call.1} parent=0
    #allocation2 [shape = 'u8[4096]{0}', space=vmem, size = 0x1000, scoped, tag = 'output window, operand 0, single buffered']
    #allocation3 [shape = 's32[1]{0}', space=sflag, size = 0x4, scoped, tag = 'scoped memory for tpu_custom_call.1']
    %7 = vsyncpa [#allocation3], 0
    // Predicated region
    $region2: #{tpu_custom_call.1} parent=1 // pred_check
      _
    $region3: #{tpu_custom_call.1} parent=1 // pred_check_branch
      %9 = sbr.rel (0) target = $region5
    $region4: #{tpu_custom_call.1} parent=1 // pred_region
      _
    $region5: #{tpu_custom_call.1} parent=1 // pred_fallthru
      _
    // Predicated region
    $region6: #{tpu_custom_call.1} parent=1 // pred_check
      _
    $region7: #{tpu_custom_call.1} parent=1 // pred_check_branch
      %11 = sbr.rel (0) target = $region9
    $region8: #{tpu_custom_call.1} parent=1 // pred_region
      _
    $region9: #{tpu_custom_call.1} parent=1 // pred_fallthru
      _
    %v12 = vld [vmem:[%s0] sm:$0xff]
    %v13 = vld [vmem:[%s0 + $0x8] sm:$0xff]
    %v14 = vld [vmem:[%s0 + $0x10] sm:$0xff]
    %v15 = vld [vmem:[%s1] sm:$0xff]
    %v16 = vld [vmem:[%s1 + $0x8] sm:$0xff]
    %v17 = vld [vmem:[%s1 + $0x10] sm:$0xff]
    %v18 = vcvt.f32.s32.to.zero.pseudo %v15
    %v19 = vcvt.f32.s32.to.zero.pseudo %v16
    %v20 = vcvt.f32.s32.to.zero.pseudo %v17
    %vm21 = vcmask 261120
    %v22 = vsel %vm21, %v12, -inf
    %23 = vmax.xlane.f32.xlu0 %v22
    %v24 = vpop.xlane.xlu0 %23
    %v25 = vsel %vm21, %v13, -inf
    %26 = vmax.xlane.f32.xlu0 %v25
    %v27 = vpop.xlane.xlu0 %26
    %v28 = vsel %vm21, %v14, -inf
    %29 = vmax.xlane.f32.xlu0 %v28
    %v30 = vpop.xlane.xlu0 %29
    %v31 = vsub.f32 %v12, %v24
    %v32 = vsub.f32 %v13, %v27
    %v33 = vsub.f32 %v14, %v30
    %v34 = vmul.f32 %v31, 1.442695
    %v35 = vpow.pop %v34
    %v36 = vmul.f32 %v32, 1.442695
    %v37 = vpow.pop %v36
    %v38 = vmul.f32 %v33, 1.442695
    %v39 = vpow.pop %v38
    %v40 = vsel %vm21, %v35, 0.0
    %41 = vadd.xlane.f32.xlu0 %v40
    %v42 = vpop.xlane.xlu0 %41
    %v43 = vsel %vm21, %v37, 0.0
    %44 = vadd.xlane.f32.xlu0 %v43
    %v45 = vpop.xlane.xlu0 %44
    %v46 = vsel %vm21, %v39, 0.0
    %47 = vadd.xlane.f32.xlu0 %v46
    %v48 = vpop.xlane.xlu0 %47
    %v49 = vlaneseq
    %v50 = vand.u32 %v49, 127
    %51 = vset.pattern.permute.xlu0 0
    %52 = vperm.xlu0 %51, %v18
    %v53 = vpop.permute.xlu0 %52
    %54 = vset.pattern.permute.xlu0 0
    %55 = vperm.xlu0 %54, %v19
    %v56 = vpop.permute.xlu0 %55
    %57 = vset.pattern.permute.xlu0 0
    %58 = vperm.xlu0 %57, %v20
    %v59 = vpop.permute.xlu0 %58
    %vm60 = vcmp.eq.s32.totalorder %v50, %v53
    %vm61 = vcmp.eq.s32.totalorder %v50, %v56
    %vm62 = vcmp.eq.s32.totalorder %v50, %v59
    %v63 = vsel %vm60, %v31, 0.0
    %v64 = vsel %vm61, %v32, 0.0
    %v65 = vsel %vm62, %v33, 0.0
    %v66 = vsel %vm21, %v63, 0.0
    %67 = vadd.xlane.f32.xlu0 %v66
    %v68 = vpop.xlane.xlu0 %67
    %v69 = vsel %vm21, %v64, 0.0
    %70 = vadd.xlane.f32.xlu0 %v69
    %v71 = vpop.xlane.xlu0 %70
    %v72 = vsel %vm21, %v65, 0.0
    %73 = vadd.xlane.f32.xlu0 %v72
    %v74 = vpop.xlane.xlu0 %73
    %v75 = vlog2.pop %v42
    %v76 = vmul.f32 %v75, 0.6931472
    %v77 = vlog2.pop %v45
    %v78 = vmul.f32 %v77, 0.6931472
    %v79 = vlog2.pop %v48
    %v80 = vmul.f32 %v79, 0.6931472
    %v81 = vsub.f32 %v68, %v76
    %v82 = vsub.f32 %v71, %v78
    %v83 = vsub.f32 %v74, %v80
    %v84 = vmul.f32 %v81, 1.442695
    %v85 = vpow.pop %v84
    %v86 = vmul.f32 %v82, 1.442695
    %v87 = vpow.pop %v86
    %v88 = vmul.f32 %v83, 1.442695
    %v89 = vpow.pop %v88
    %v90 = vsub.f32 0.0, %v15
    %v91 = vsub.f32 0.0, %v16
    %v92 = vsub.f32 0.0, %v17
    %v93 = vmul.f32 %v90, %v81
    %v94 = vmul.f32 %v91, %v82
    %v95 = vmul.f32 %v92, %v83
    %v96 = vsub.f32 1.0, %v85
    %v97 = vsub.f32 1.0, %v87
    %v98 = vsub.f32 1.0, %v89
    %v99 = vmax.f32 %v96, 0.0
    %v100 = vmax.f32 %v97, 0.0
    %v101 = vmax.f32 %v98, 0.0
    %v102 = vmul.f32 %v99, %v99
    %v103 = vmul.f32 %v100, %v100
    %v104 = vmul.f32 %v101, %v101
    %v105 = vmul.f32 %v102, %v93
    %v106 = vmul.f32 %v103, %v94
    %v107 = vmul.f32 %v104, %v95
    %111 = vrot.lane.b32.xlu0 %v105, 127
    %v112 = vpop.permute.xlu0 %111
    %113 = vrot.lane.b32.xlu0 %v106, 127
    %v114 = vpop.permute.xlu0 %113
    %115 = vrot.lane.b32.xlu0 %v107, 127
    %v116 = vpop.permute.xlu0 %115
    %vm120 = vcmask 7168
    %v121 = vsel %vm120, %v112, 0.0
    %v122 = vsel %vm120, %v114, 0.0
    %v123 = vadd.f32 %v121, %v122
    %v124 = vsel %vm120, %v116, 0.0
    %v125 = vadd.f32 %v123, %v124
    %126 = vadd.xlane.f32.xlu0 %v125
    %v127 = vpop.xlane.xlu0 %126
    %v128 = vrot.slane %v127, 4
    %v129 = vadd.f32 %v127, %v128
    %v130 = vrot.slane %v129, 2
    %v131 = vadd.f32 %v129, %v130
    %v132 = vrot.slane %v131, 1
    %v133 = vadd.f32 %v131, %v132
    %s134 = vtos %v133
    %v135 = vlaneseq
    %v136 = vshrl.u32 %v135, 7
    %vm137 = vcmp.eq.s32.totalorder %v136, 0
    %vm138 = vcmp.eq.s32.totalorder %v50, 0
    %vm139 = vmand %vm137, %vm138
    %v140 = vstv %s134
    %v141 = vsel %vm139, %v140, 0.0
    %142 = vst [vmem:[#allocation2] sm:$0xff] %v141
    // Predicated region
    $region10: #{tpu_custom_call.1} parent=1 // pred_check
      _
    $region11: #{tpu_custom_call.1} parent=1 // pred_check_branch
      %144 = sbr.rel (0) target = $region13
    $region12: #{tpu_custom_call.1} parent=1 // pred_region
      %146 = vsyncadd [#allocation3], 0
      %s148 = sshll.u32 [#allocation2], 4
      %s149 = int_to_ptr.vmem [resolvable:$true] %s148
      %s150 = sshll.u32 %s2, 4
      %s151 = int_to_ptr.hbm [resolvable:$true] %s150
      %153 = dma.vmem_to_hbm [thread:$0]  %s149, 128, %s151, [#allocation3]
    $region13: #{tpu_custom_call.1} parent=1 // pred_fallthru
      _
    // Predicated region
    $region14: #{tpu_custom_call.1} parent=1 // pred_check
      _
    $region15: #{tpu_custom_call.1} parent=1 // pred_check_branch
      %155 = sbr.rel (0) target = $region17
    $region16: #{tpu_custom_call.1} parent=1 // pred_region
      %157 = dma.done [#allocation3], 128
    $region17: #{tpu_custom_call.1} parent=1 // pred_fallthru
      _
    %158 = vsyncpa [#allocation3], 1

</llo_original>
